<compile_context>
chip_gen: v7x
topology: tpu7x:2x2x1
jax: 0.10.0
libtpu: 0.0.40
codegen_flags: <defaults>
</compile_context>

<pallas_src>
import jax
import jax.numpy as jnp
from jax.experimental import pallas as pl
from jax.experimental.pallas import tpu as pltpu

LN_EPS = 1e-5
SUBLANE = 8


def _ffnn_kernel(x_ref, w1_ref, b1_ref, g_ref, beta_ref,
                 w2_ref, b2_ref, w3_ref, b3_ref, o_ref):
    # layer1: Linear(in_dim, 64).  Cast handles the optional bf16 obs stream
    # (no-op for f32); accumulation is always f32 on the MXU.
    x = x_ref[...].astype(jnp.float32)
    h1 = jnp.dot(x, w1_ref[...], preferred_element_type=jnp.float32) + b1_ref[...]

    # ln1: LayerNorm(64), biased variance (matches PyTorch).  Centered
    # two-pass moments for robustness; gamma folded into the rsqrt scale.
    mean = jnp.mean(h1, axis=-1, keepdims=True)
    d = h1 - mean
    var = jnp.mean(d * d, axis=-1, keepdims=True)
    s = jax.lax.rsqrt(var + LN_EPS) * g_ref[...]
    a1 = jnp.maximum(d * s + beta_ref[...], 0.0)            # relu

    # layer2: Linear(64, 64) + relu
    a2 = jnp.maximum(
        jnp.dot(a1, w2_ref[...], preferred_element_type=jnp.float32) + b2_ref[...],
        0.0)

    # layer3: Linear(64, out_dim) — direct store into the (tile_b, out_dim)
    # block (lane-masked vst when out_dim < 128; no padded writeback).
    o_ref[...] = (jnp.dot(a2, w3_ref[...], preferred_element_type=jnp.float32)
                  + b3_ref[...]).astype(o_ref.dtype)


def _round_up(x, m):
    return pl.cdiv(x, m) * m


def feedforward_nn(obs, params, *, tile_b_max=2048, obs_dtype=None):
    """Fused in_dim-64-64-out_dim MLP forward, batch-tiled over a 1-D grid."""
    w1, b1, g, beta, w2, b2, w3, b3 = params
    batch, in_dim = obs.shape
    hidden = w1.shape[1]
    out_dim = w3.shape[1]

    if obs_dtype is not None:            # opt-in bf16 streaming (v5e roofline)
        obs = obs.astype(obs_dtype)

    # --- batch tiling: no wrapper padding; Pallas masks the edge block. -----
    if batch <= SUBLANE:
        tile_b = batch                   # single tile; block == full array dim
    else:
        # >= 2 balanced tiles so v7x's two TensorCores both get work and the
        # masked remainder of the last block is < 8 rows.
        num_tiles = max(pl.cdiv(batch, tile_b_max), 2)
        tile_b = _round_up(pl.cdiv(batch, num_tiles), SUBLANE)
    grid = (pl.cdiv(batch, tile_b),)

    const2d = lambda i: (0, 0)

    # Advisory cost estimate: lets XLA overlap neighbors with this short,
    # mem-bound custom call.
    weight_bytes = sum(int(a.size) * a.dtype.itemsize
                       for a in (w1, b1, g, beta, w2, b2, w3, b3))
    cost = pl.CostEstimate(
        flops=2 * batch * (in_dim * hidden + hidden * hidden + hidden * out_dim),
        transcendentals=batch,           # one rsqrt per row
        bytes_accessed=batch * (in_dim * obs.dtype.itemsize + out_dim * 4)
                       + weight_bytes)

    # VMEM budget: 2x double-buffered obs/out streams + 2x resident weights
    # + f32 intermediates.  Only override the scoped default (v5e 16 MiB /
    # v7x 32 MiB) when the estimate threatens it; cap at v7x's 64 MiB.
    vmem_est = (2 * tile_b * (in_dim * obs.dtype.itemsize + out_dim * 4)
                + 2 * weight_bytes
                + 8 * tile_b * hidden * 4)
    compiler_kwargs = dict(dimension_semantics=("parallel",))
    if vmem_est > 12 * 1024 * 1024:
        compiler_kwargs["vmem_limit_bytes"] = min(vmem_est * 3 // 2,
                                                  64 * 1024 * 1024)

    return pl.pallas_call(
        _ffnn_kernel,
        out_shape=jax.ShapeDtypeStruct((batch, out_dim), jnp.float32),
        grid=grid,
        in_specs=[
            pl.BlockSpec((tile_b, in_dim), lambda i: (i, 0)),   # obs  (streamed)
            pl.BlockSpec((in_dim, hidden), const2d),            # w1   (resident)
            pl.BlockSpec((1, hidden), const2d),                 # b1
            pl.BlockSpec((1, hidden), const2d),                 # gamma
            pl.BlockSpec((1, hidden), const2d),                 # beta
            pl.BlockSpec((hidden, hidden), const2d),            # w2
            pl.BlockSpec((1, hidden), const2d),                 # b2
            pl.BlockSpec((hidden, out_dim), const2d),           # w3
            pl.BlockSpec((1, out_dim), const2d),                # b3
        ],
        out_specs=pl.BlockSpec((tile_b, out_dim), lambda i: (i, 0)),
        compiler_params=pltpu.CompilerParams(**compiler_kwargs),
        cost_estimate=cost,
    )(obs, w1, b1, g, beta, w2, b2, w3, b3)


def init_params(key, in_dim, out_dim, hidden=64):
    """Parameter init mirroring the PyTorch module.

    Weights ~ N(0, 0.1) as in the module; biases ~ U(-1/sqrt(fan_in),
    1/sqrt(fan_in)) (PyTorch nn.Linear default); LayerNorm gamma=1, beta=0.
    """
    ks = jax.random.split(key, 6)
    b_in = 1.0 / jnp.sqrt(in_dim)
    b_h = 1.0 / jnp.sqrt(hidden)
    w1 = 0.1 * jax.random.normal(ks[0], (in_dim, hidden), jnp.float32)
    b1 = jax.random.uniform(ks[1], (1, hidden), jnp.float32, -b_in, b_in)
    g = jnp.ones((1, hidden), jnp.float32)
    beta = jnp.zeros((1, hidden), jnp.float32)
    w2 = 0.1 * jax.random.normal(ks[2], (hidden, hidden), jnp.float32)
    b2 = jax.random.uniform(ks[3], (1, hidden), jnp.float32, -b_h, b_h)
    w3 = 0.1 * jax.random.normal(ks[4], (hidden, out_dim), jnp.float32)
    b3 = jax.random.uniform(ks[5], (1, out_dim), jnp.float32, -b_h, b_h)
    return (w1, b1, g, beta, w2, b2, w3, b3)


def _reference(obs, params):
    w1, b1, g, beta, w2, b2, w3, b3 = params
    h1 = obs @ w1 + b1
    mean = jnp.mean(h1, axis=-1, keepdims=True)
    var = jnp.mean((h1 - mean) ** 2, axis=-1, keepdims=True)
    h1n = (h1 - mean) * jax.lax.rsqrt(var + LN_EPS) * g + beta
    a1 = jnp.maximum(h1n, 0.0)
    a2 = jnp.maximum(a1 @ w2 + b2, 0.0)
    return a2 @ w3 + b3


if __name__ == "__main__":
    in_dim, out_dim = 32, 8
    key = jax.random.PRNGKey(0)
    k_obs, k_par, k_obs2 = jax.random.split(key, 3)
    params = init_params(k_par, in_dim, out_dim)

    # Small batch (single tile, block == full array).
    obs = jax.random.normal(k_obs, (8, in_dim), jnp.float32)
    out = jax.block_until_ready(feedforward_nn(obs, params))
    ref = _reference(obs, params)
    assert out.shape == (8, out_dim)
    assert jnp.allclose(out, ref, atol=1e-4, rtol=1e-4)

    # Larger non-divisible batch: 2 balanced tiles of 264 rows, masked edge
    # block, no wrapper pad/slice.
    obs2 = jax.random.normal(k_obs2, (520, in_dim), jnp.float32)
    out2 = jax.block_until_ready(feedforward_nn(obs2, params))
    ref2 = _reference(obs2, params)
    assert out2.shape == (520, out_dim)
    assert jnp.allclose(out2, ref2, atol=1e-4, rtol=1e-4)

    # Opt-in bf16 obs streaming (v5e bandwidth mode): relaxed tolerance.
    out3 = jax.block_until_ready(
        feedforward_nn(obs2, params, obs_dtype=jnp.bfloat16))
    assert out3.shape == (520, out_dim)
    assert jnp.allclose(out3, ref2, atol=5e-2, rtol=5e-2)

    print("KERNEL_OK")
</pallas_src>

<mosaic_0001>
module attributes {stable_mosaic.version = 11 : i64} {
  func.func @_ffnn_kernel(%arg0: i32, %arg1: memref<8x32xf32, #tpu.memory_space<vmem>>, %arg2: memref<32x64xf32, #tpu.memory_space<vmem>>, %arg3: memref<1x64xf32, #tpu.memory_space<vmem>>, %arg4: memref<1x64xf32, #tpu.memory_space<vmem>>, %arg5: memref<1x64xf32, #tpu.memory_space<vmem>>, %arg6: memref<64x64xf32, #tpu.memory_space<vmem>>, %arg7: memref<1x64xf32, #tpu.memory_space<vmem>>, %arg8: memref<64x8xf32, #tpu.memory_space<vmem>>, %arg9: memref<1x8xf32, #tpu.memory_space<vmem>>, %arg10: memref<8x8xf32, #tpu.memory_space<vmem>>) attributes {dimension_semantics = [#tpu.dimension_semantics<parallel>], iteration_bounds = array<i64: 1>, scalar_prefetch = 0 : i64, scratch_operands = 0 : i64, tpu.core_type = #tpu.core_type<tc>, window_params = [{transform_indices = @transform_0, window_bounds = array<i64: 8, 32>}, {pipeline_mode = #tpu.pipeline_mode<synchronous>, transform_indices = @transform_1, window_bounds = array<i64: 32, 64>}, {pipeline_mode = #tpu.pipeline_mode<synchronous>, transform_indices = @transform_2, window_bounds = array<i64: 1, 64>}, {pipeline_mode = #tpu.pipeline_mode<synchronous>, transform_indices = @transform_3, window_bounds = array<i64: 1, 64>}, {pipeline_mode = #tpu.pipeline_mode<synchronous>, transform_indices = @transform_4, window_bounds = array<i64: 1, 64>}, {pipeline_mode = #tpu.pipeline_mode<synchronous>, transform_indices = @transform_5, window_bounds = array<i64: 64, 64>}, {pipeline_mode = #tpu.pipeline_mode<synchronous>, transform_indices = @transform_6, window_bounds = array<i64: 1, 64>}, {pipeline_mode = #tpu.pipeline_mode<synchronous>, transform_indices = @transform_7, window_bounds = array<i64: 64, 8>}, {pipeline_mode = #tpu.pipeline_mode<synchronous>, transform_indices = @transform_8, window_bounds = array<i64: 1, 8>}, {transform_indices = @transform_9, window_bounds = array<i64: 8, 8>}]} {
    %c0 = arith.constant 0 : index
    %c0_0 = arith.constant 0 : index
    %0 = vector.load %arg1[%c0, %c0_0] : memref<8x32xf32, #tpu.memory_space<vmem>>, vector<8x32xf32>
    %c0_1 = arith.constant 0 : index
    %c0_2 = arith.constant 0 : index
    %1 = vector.load %arg2[%c0_1, %c0_2] : memref<32x64xf32, #tpu.memory_space<vmem>>, vector<32x64xf32>
    %cst = arith.constant dense<0.000000e+00> : vector<8x64xf32>
    %2 = tpu.matmul %0, %1, %cst {dimension_numbers = #tpu.dot_dimension_numbers<[1], [0], [0], [1], [0, 0, 1, 1], [], []>} : vector<8x32xf32>, vector<32x64xf32>, vector<8x64xf32> -> vector<8x64xf32>
    %c0_3 = arith.constant 0 : index
    %c0_4 = arith.constant 0 : index
    %3 = vector.load %arg3[%c0_3, %c0_4] : memref<1x64xf32, #tpu.memory_space<vmem>>, vector<1x64xf32>
    %4 = vector.broadcast %3 : vector<1x64xf32> to vector<8x64xf32>
    %5 = arith.addf %2, %4 : vector<8x64xf32>
    %cst_5 = arith.constant dense<0.000000e+00> : vector<8xf32>
    %6 = vector.multi_reduction <add>, %5, %cst_5 [1] : vector<8x64xf32> to vector<8xf32>
    %7 = vector.shape_cast %6 : vector<8xf32> to vector<8x1xf32>
    %cst_6 = arith.constant 6.400000e+01 : f32
    %8 = vector.broadcast %cst_6 : f32 to vector<8x1xf32>
    %9 = arith.divf %7, %8 : vector<8x1xf32>
    %10 = vector.broadcast %9 : vector<8x1xf32> to vector<8x64xf32>
    %11 = arith.subf %5, %10 : vector<8x64xf32>
    %12 = arith.mulf %11, %11 : vector<8x64xf32>
    %cst_7 = arith.constant dense<0.000000e+00> : vector<8xf32>
    %13 = vector.multi_reduction <add>, %12, %cst_7 [1] : vector<8x64xf32> to vector<8xf32>
    %14 = vector.shape_cast %13 : vector<8xf32> to vector<8x1xf32>
    %cst_8 = arith.constant 6.400000e+01 : f32
    %15 = vector.broadcast %cst_8 : f32 to vector<8x1xf32>
    %16 = arith.divf %14, %15 : vector<8x1xf32>
    %cst_9 = arith.constant 9.99999974E-6 : f32
    %17 = vector.broadcast %cst_9 : f32 to vector<8x1xf32>
    %18 = arith.addf %16, %17 : vector<8x1xf32>
    %19 = math.rsqrt %18 : vector<8x1xf32>
    %c0_10 = arith.constant 0 : index
    %c0_11 = arith.constant 0 : index
    %20 = vector.load %arg4[%c0_10, %c0_11] : memref<1x64xf32, #tpu.memory_space<vmem>>, vector<1x64xf32>
    %21 = vector.broadcast %19 : vector<8x1xf32> to vector<8x64xf32>
    %22 = vector.broadcast %20 : vector<1x64xf32> to vector<8x64xf32>
    %23 = arith.mulf %21, %22 : vector<8x64xf32>
    %24 = arith.mulf %11, %23 : vector<8x64xf32>
    %c0_12 = arith.constant 0 : index
    %c0_13 = arith.constant 0 : index
    %25 = vector.load %arg5[%c0_12, %c0_13] : memref<1x64xf32, #tpu.memory_space<vmem>>, vector<1x64xf32>
    %26 = vector.broadcast %25 : vector<1x64xf32> to vector<8x64xf32>
    %27 = arith.addf %24, %26 : vector<8x64xf32>
    %cst_14 = arith.constant 0.000000e+00 : f32
    %28 = vector.broadcast %cst_14 : f32 to vector<8x64xf32>
    %29 = arith.maximumf %27, %28 : vector<8x64xf32>
    %c0_15 = arith.constant 0 : index
    %c0_16 = arith.constant 0 : index
    %30 = vector.load %arg6[%c0_15, %c0_16] : memref<64x64xf32, #tpu.memory_space<vmem>>, vector<64x64xf32>
    %cst_17 = arith.constant dense<0.000000e+00> : vector<8x64xf32>
    %31 = tpu.matmul %29, %30, %cst_17 {dimension_numbers = #tpu.dot_dimension_numbers<[1], [0], [0], [1], [0, 0, 1, 1], [], []>} : vector<8x64xf32>, vector<64x64xf32>, vector<8x64xf32> -> vector<8x64xf32>
    %c0_18 = arith.constant 0 : index
    %c0_19 = arith.constant 0 : index
    %32 = vector.load %arg7[%c0_18, %c0_19] : memref<1x64xf32, #tpu.memory_space<vmem>>, vector<1x64xf32>
    %33 = vector.broadcast %32 : vector<1x64xf32> to vector<8x64xf32>
    %34 = arith.addf %31, %33 : vector<8x64xf32>
    %cst_20 = arith.constant 0.000000e+00 : f32
    %35 = vector.broadcast %cst_20 : f32 to vector<8x64xf32>
    %36 = arith.maximumf %34, %35 : vector<8x64xf32>
    %c0_21 = arith.constant 0 : index
    %c0_22 = arith.constant 0 : index
    %37 = vector.load %arg8[%c0_21, %c0_22] : memref<64x8xf32, #tpu.memory_space<vmem>>, vector<64x8xf32>
    %cst_23 = arith.constant dense<0.000000e+00> : vector<8x8xf32>
    %38 = tpu.matmul %36, %37, %cst_23 {dimension_numbers = #tpu.dot_dimension_numbers<[1], [0], [0], [1], [0, 0, 1, 1], [], []>} : vector<8x64xf32>, vector<64x8xf32>, vector<8x8xf32> -> vector<8x8xf32>
    %c0_24 = arith.constant 0 : index
    %c0_25 = arith.constant 0 : index
    %39 = vector.load %arg9[%c0_24, %c0_25] : memref<1x8xf32, #tpu.memory_space<vmem>>, vector<1x8xf32>
    %40 = vector.broadcast %39 : vector<1x8xf32> to vector<8x8xf32>
    %41 = arith.addf %38, %40 : vector<8x8xf32>
    %c0_26 = arith.constant 0 : index
    %c0_27 = arith.constant 0 : index
    %42 = vector.load %arg10[%c0_26, %c0_27] : memref<8x8xf32, #tpu.memory_space<vmem>>, vector<8x8xf32>
    tpu.vector_store %arg10[%c0_26, %c0_27], %41 {strides = array<i32>} : memref<8x8xf32, #tpu.memory_space<vmem>>, vector<8x8xf32>,
    return
  }
  func.func @transform_0(%arg0: i32) -> (i32, i32) {
    %c0_i32 = arith.constant 0 : i32
    %c0_i32_0 = arith.constant 0 : i32
    return %arg0, %c0_i32 : i32, i32
  }
  func.func @transform_1(%arg0: i32) -> (i32, i32) {
    %c0_i32 = arith.constant 0 : i32
    %c0_i32_0 = arith.constant 0 : i32
    %c0_i32_1 = arith.constant 0 : i32
    return %c0_i32, %c0_i32_0 : i32, i32
  }
  func.func @transform_2(%arg0: i32) -> (i32, i32) {
    %c0_i32 = arith.constant 0 : i32
    %c0_i32_0 = arith.constant 0 : i32
    %c0_i32_1 = arith.constant 0 : i32
    return %c0_i32, %c0_i32_0 : i32, i32
  }
  func.func @transform_3(%arg0: i32) -> (i32, i32) {
    %c0_i32 = arith.constant 0 : i32
    %c0_i32_0 = arith.constant 0 : i32
    %c0_i32_1 = arith.constant 0 : i32
    return %c0_i32, %c0_i32_0 : i32, i32
  }
  func.func @transform_4(%arg0: i32) -> (i32, i32) {
    %c0_i32 = arith.constant 0 : i32
    %c0_i32_0 = arith.constant 0 : i32
    %c0_i32_1 = arith.constant 0 : i32
    return %c0_i32, %c0_i32_0 : i32, i32
  }
  func.func @transform_5(%arg0: i32) -> (i32, i32) {
    %c0_i32 = arith.constant 0 : i32
    %c0_i32_0 = arith.constant 0 : i32
    %c0_i32_1 = arith.constant 0 : i32
    return %c0_i32, %c0_i32_0 : i32, i32
  }
  func.func @transform_6(%arg0: i32) -> (i32, i32) {
    %c0_i32 = arith.constant 0 : i32
    %c0_i32_0 = arith.constant 0 : i32
    %c0_i32_1 = arith.constant 0 : i32
    return %c0_i32, %c0_i32_0 : i32, i32
  }
  func.func @transform_7(%arg0: i32) -> (i32, i32) {
    %c0_i32 = arith.constant 0 : i32
    %c0_i32_0 = arith.constant 0 : i32
    %c0_i32_1 = arith.constant 0 : i32
    return %c0_i32, %c0_i32_0 : i32, i32
  }
  func.func @transform_8(%arg0: i32) -> (i32, i32) {
    %c0_i32 = arith.constant 0 : i32
    %c0_i32_0 = arith.constant 0 : i32
    %c0_i32_1 = arith.constant 0 : i32
    return %c0_i32, %c0_i32_0 : i32, i32
  }
  func.func @transform_9(%arg0: i32) -> (i32, i32) {
    %c0_i32 = arith.constant 0 : i32
    %c0_i32_0 = arith.constant 0 : i32
    return %arg0, %c0_i32 : i32, i32
  }
}

</mosaic_0001>

<llo_original>
// kernel: tpu_custom_call.1
$region0: #{tpu_custom_call.1}
  #allocation0 [shape = 'u32[]', space=smem, size = 0x4, offset = 0x4, fixed_abs, tag = 'smem constant byte address 0x4 - core index']
  #allocation1 [shape = 'u32[144,128]{1,0:T(1,128)}', space=vmem, size = 0x12000, scoped, tag = 'internal scratch']
  %s0 = inlined_call_operand.vmem [shape: f32[8,32], index: 0, kind: input, shape index: {}]
  %s1 = inlined_call_operand.hbm [shape: f32[32,64], index: 1, kind: input, shape index: {}]
  %s2 = inlined_call_operand.vmem [shape: f32[1,64], index: 2, kind: input, shape index: {}]
  %s3 = inlined_call_operand.vmem [shape: f32[1,64], index: 3, kind: input, shape index: {}]
  %s4 = inlined_call_operand.vmem [shape: f32[1,64], index: 4, kind: input, shape index: {}]
  %s5 = inlined_call_operand.vmem [shape: f32[64,64], index: 5, kind: input, shape index: {}]
  %s6 = inlined_call_operand.vmem [shape: f32[1,64], index: 6, kind: input, shape index: {}]
  %s7 = inlined_call_operand.vmem [shape: f32[64,8], index: 7, kind: input, shape index: {}]
  %s8 = inlined_call_operand.vmem [shape: f32[1,8], index: 8, kind: input, shape index: {}]
  %s9 = inlined_call_operand.hbm [shape: f32[8,8], index: 9, kind: output, shape index: {}]
  %s10 = sld [smem:[#allocation0]]
  $region50: #{tpu_custom_call.1} parent=0
    _
  %s12 = ssub.s32 1, %s10
  %s13 = scalar_select 0, %s12, %s10
  $region1: #{tpu_custom_call.1} parent=0
    #allocation2 [shape = 'u8[16384]{0}', space=vmem, size = 0x4000, scoped, tag = 'input window, operand 1, single buffered']
    #allocation3 [shape = 's32[1]{0}', space=sflag, size = 0x4, scoped, tag = 'scoped memory for tpu_custom_call.1']
    #allocation4 [shape = 's32[1]{0}', space=sflag, size = 0x4, scoped, tag = 'scoped memory for tpu_custom_call.1']
    #allocation5 [shape = 'u8[4096]{0}', space=vmem, size = 0x1000, scoped, tag = 'output window, operand 0, single buffered']
    %14 = vsyncpa [#allocation3], 0
    %15 = vsyncpa [#allocation4], 0
    // Predicated region
    $region2: #{tpu_custom_call.1} parent=1 // pred_check
      _
    $region3: #{tpu_custom_call.1} parent=1 // pred_check_branch
      %17 = sbr.rel (0) target = $region5
    $region4: #{tpu_custom_call.1} parent=1 // pred_region
      _
    $region5: #{tpu_custom_call.1} parent=1 // pred_fallthru
      _
    // Predicated region
    $region6: #{tpu_custom_call.1} parent=1 // pred_check
      _
    $region7: #{tpu_custom_call.1} parent=1 // pred_check_branch
      %19 = sbr.rel (0) target = $region9
    $region8: #{tpu_custom_call.1} parent=1 // pred_region
      %s21 = ssub.s32 512, 512
      %22 = vsyncadd [#allocation3], %s21
      %s23 = sshll.u32 [#allocation2], 4
      %s24 = int_to_ptr.vmem [resolvable:$true] %s23
      %29 = dma.hbm_to_vmem [thread:$0]  %s1, 512, %s24, [#allocation3], 128, 128, 8
    $region9: #{tpu_custom_call.1} parent=1 // pred_fallthru
      _
    // Predicated region
    $region10: #{tpu_custom_call.1} parent=1 // pred_check
      _
    $region11: #{tpu_custom_call.1} parent=1 // pred_check_branch
      %31 = sbr.rel (0) target = $region13
    $region12: #{tpu_custom_call.1} parent=1 // pred_region
      _
    $region13: #{tpu_custom_call.1} parent=1 // pred_fallthru
      _
    // Predicated region
    $region14: #{tpu_custom_call.1} parent=1 // pred_check
      _
    $region15: #{tpu_custom_call.1} parent=1 // pred_check_branch
      %33 = sbr.rel (0) target = $region17
    $region16: #{tpu_custom_call.1} parent=1 // pred_region
      _
    $region17: #{tpu_custom_call.1} parent=1 // pred_fallthru
      _
    // Predicated region
    $region18: #{tpu_custom_call.1} parent=1 // pred_check
      _
    $region19: #{tpu_custom_call.1} parent=1 // pred_check_branch
      %35 = sbr.rel (0) target = $region21
    $region20: #{tpu_custom_call.1} parent=1 // pred_region
      _
    $region21: #{tpu_custom_call.1} parent=1 // pred_fallthru
      _
    // Predicated region
    $region22: #{tpu_custom_call.1} parent=1 // pred_check
      _
    $region23: #{tpu_custom_call.1} parent=1 // pred_check_branch
      %37 = sbr.rel (0) target = $region25
    $region24: #{tpu_custom_call.1} parent=1 // pred_region
      _
    $region25: #{tpu_custom_call.1} parent=1 // pred_fallthru
      _
    // Predicated region
    $region26: #{tpu_custom_call.1} parent=1 // pred_check
      _
    $region27: #{tpu_custom_call.1} parent=1 // pred_check_branch
      %39 = sbr.rel (0) target = $region29
    $region28: #{tpu_custom_call.1} parent=1 // pred_region
      _
    $region29: #{tpu_custom_call.1} parent=1 // pred_fallthru
      _
    // Predicated region
    $region30: #{tpu_custom_call.1} parent=1 // pred_check
      _
    $region31: #{tpu_custom_call.1} parent=1 // pred_check_branch
      %41 = sbr.rel (0) target = $region33
    $region32: #{tpu_custom_call.1} parent=1 // pred_region
      _
    $region33: #{tpu_custom_call.1} parent=1 // pred_fallthru
      _
    // Predicated region
    $region34: #{tpu_custom_call.1} parent=1 // pred_check
      _
    $region35: #{tpu_custom_call.1} parent=1 // pred_check_branch
      %43 = sbr.rel (0) target = $region37
    $region36: #{tpu_custom_call.1} parent=1 // pred_region
      _
    $region37: #{tpu_custom_call.1} parent=1 // pred_fallthru
      _
    // Predicated region
    $region38: #{tpu_custom_call.1} parent=1 // pred_check
      _
    $region39: #{tpu_custom_call.1} parent=1 // pred_check_branch
      %45 = sbr.rel (0) target = $region41
    $region40: #{tpu_custom_call.1} parent=1 // pred_region
      %46 = dma.done [#allocation3], 512
    $region41: #{tpu_custom_call.1} parent=1 // pred_fallthru
      _
    %v47 = vld [vmem:[%s0] sm:$0xff]
    %v48 = vld [vmem:[#allocation2] sm:$0xff]
    %v49 = vld [vmem:[#allocation2 + $0x8] sm:$0xff]
    %v50 = vld [vmem:[#allocation2 + $0x10] sm:$0xff]
    %v51 = vld [vmem:[#allocation2 + $0x18] sm:$0xff]
    %v52 = vld [vmem:[%s2] sm:$0x1]
    %v54 = vlaneseq
    %v55 = vshrl.u32 %v54, 7
    %v56 = vsub.s32 0, %v55
    %v57 = vrot.slane %v52, %v56
    %vm59 = vcmask 261120
    %v61 = vsel %vm59, %v47, 0
    %63 = vmatprep.subr.mxu0 0.0
    %64 = vmatpush1.msra.mxu0 %v48
    %65 = vmatprep.subr.mxu0 0.0
    %66 = vmatpush1.msra.mxu0 %v49
    %67 = vmatprep.subr.mxu0 0.0
    %68 = vmatpush1.msra.mxu0 %v50
    %69 = vmatprep.subr.mxu0 0.0
    %70 = vmatpush1.msra.mxu0 %v51
    %71 = vmatprep.subr.mxu0 0.0
    %72 = vmatpush1.msra.mxu0 0.0
    %73 = vmatprep.subr.mxu0 0.0
    %74 = vmatpush1.msra.mxu0 0.0
    %75 = vmatprep.subr.mxu0 0.0
    %76 = vmatpush1.msra.mxu0 0.0
    %77 = vmatprep.subr.mxu0 0.0
    %78 = vmatpush1.msra.mxu0 0.0
    %79 = vmatprep.subr.mxu0 0.0
    %80 = vmatpush1.msra.mxu0 0.0
    %81 = vmatprep.subr.mxu0 0.0
    %82 = vmatpush1.msra.mxu0 0.0
    %83 = vmatprep.subr.mxu0 0.0
    %84 = vmatpush1.msra.mxu0 0.0
    %85 = vmatprep.subr.mxu0 0.0
    %86 = vmatpush1.msra.mxu0 0.0
    %87 = vmatprep.subr.mxu0 0.0
    %88 = vmatpush1.msra.mxu0 0.0
    %89 = vmatprep.subr.mxu0 0.0
    %90 = vmatpush1.msra.mxu0 0.0
    %91 = vmatprep.subr.mxu0 0.0
    %92 = vmatpush1.msra.mxu0 0.0
    %93 = vmatprep.subr.mxu0 0.0
    %94 = vmatpush1.msra.mxu0 0.0
    %95 = vmatprep.subr.mxu0 0.0
    %96 = vmatpush1.msra.mxu0 0.0
    %97 = vmatprep.subr.mxu0 0.0
    %98 = vmatpush1.msra.mxu0 0.0
    %99 = vmatprep.subr.mxu0 0.0
    %100 = vmatpush1.msra.mxu0 0.0
    %101 = vmatprep.subr.mxu0 0.0
    %102 = vmatpush1.msra.mxu0 0.0
    %103 = vmatprep.subr.mxu0 0.0
    %104 = vmatpush1.msra.mxu0 0.0
    %105 = vmatprep.subr.mxu0 0.0
    %106 = vmatpush1.msra.mxu0 0.0
    %107 = vmatprep.subr.mxu0 0.0
    %108 = vmatpush1.msra.mxu0 0.0
    %109 = vmatprep.subr.mxu0 0.0
    %110 = vmatpush1.msra.mxu0 0.0
    %111 = vmatprep.subr.mxu0 0.0
    %112 = vmatpush1.msra.mxu0 0.0
    %113 = vmatprep.subr.mxu0 0.0
    %114 = vmatpush1.msra.mxu0 0.0
    %115 = vmatprep.subr.mxu0 0.0
    %116 = vmatpush1.msra.mxu0 0.0
    %117 = vmatprep.subr.mxu0 0.0
    %118 = vmatpush1.msra.mxu0 0.0
    %119 = vmatprep.subr.mxu0 0.0
    %120 = vmatpush1.msra.mxu0 0.0
    %121 = vmatprep.subr.mxu0 0.0
    %122 = vmatpush1.msra.mxu0 0.0
    %123 = vmatprep.subr.mxu0 0.0
    %124 = vmatpush1.msra.mxu0 0.0
    %125 = vmatprep.subr.mxu0 0.0
    %126 = vmatpush1.msra.mxu0 0.0
    %127 = vmatprep.mubr.f32.mxu0 0.0
    %128 = vmatmul.mubr.f32.gmra.mrb[0].mxu0 %v61
    %v129 = vpop.f32.mrb[0].mxu0
    %v130 = vadd.f32 %v57, %v129
    %v131 = vpop.f32.mrb[0].mxu0
    %132 = vdwg.mxu0
    %vm133 = vcmask 523264
    %v134 = vsel %vm133, %v130, 0.0
    %135 = vadd.xlane.f32.xlu0 %v134
    %v136 = vpop.xlane.xlu0 %135
    %v137 = vrcp.pop 64.0
    %v138 = vmul.f32 %v136, %v137
    %v139 = vsub.f32 %v130, %v138
    %v140 = vmul.f32 %v139, %v139
    %v141 = vsel %vm133, %v140, 0.0
    %142 = vadd.xlane.f32.xlu0 %v141
    %v143 = vpop.xlane.xlu0 %142
    %v144 = vmul.f32 %v143, %v137
    %v145 = vadd.f32 %v144, 1e-05
    %v146 = vrsqrt.pop %v145
    %v147 = vld [vmem:[%s3] sm:$0x1]
    %v149 = vlaneseq
    %v150 = vshrl.u32 %v149, 7
    %v151 = vsub.s32 0, %v150
    %v152 = vrot.slane %v147, %v151
    %v154 = vmul.f32 %v146, %v152
    %v155 = vmul.f32 %v139, %v154
    %v156 = vld [vmem:[%s4] sm:$0x1]
    %v158 = vlaneseq
    %v159 = vshrl.u32 %v158, 7
    %v160 = vsub.s32 0, %v159
    %v161 = vrot.slane %v156, %v160
    %v163 = vadd.f32 %v155, %v161
    %v164 = vmax.f32 %v163, 0.0
    %v165 = vld [vmem:[%s5] sm:$0xff]
    %v166 = vld [vmem:[%s5 + $0x8] sm:$0xff]
    %v167 = vld [vmem:[%s5 + $0x10] sm:$0xff]
    %v168 = vld [vmem:[%s5 + $0x18] sm:$0xff]
    %v169 = vld [vmem:[%s5 + $0x20] sm:$0xff]
    %v170 = vld [vmem:[%s5 + $0x28] sm:$0xff]
    %v171 = vld [vmem:[%s5 + $0x30] sm:$0xff]
    %v172 = vld [vmem:[%s5 + $0x38] sm:$0xff]
    %v173 = vld [vmem:[%s6] sm:$0x1]
    %v175 = vlaneseq
    %v176 = vshrl.u32 %v175, 7
    %v177 = vsub.s32 0, %v176
    %v178 = vrot.slane %v173, %v177
    %v181 = vsel %vm133, %v164, 0
    %183 = vmatprep.subr.mxu0 0.0
    %184 = vmatpush1.msra.mxu0 %v165
    %185 = vmatprep.subr.mxu0 0.0
    %186 = vmatpush1.msra.mxu0 %v166
    %187 = vmatprep.subr.mxu0 0.0
    %188 = vmatpush1.msra.mxu0 %v167
    %189 = vmatprep.subr.mxu0 0.0
    %190 = vmatpush1.msra.mxu0 %v168
    %191 = vmatprep.subr.mxu0 0.0
    %192 = vmatpush1.msra.mxu0 %v169
    %193 = vmatprep.subr.mxu0 0.0
    %194 = vmatpush1.msra.mxu0 %v170
    %195 = vmatprep.subr.mxu0 0.0
    %196 = vmatpush1.msra.mxu0 %v171
    %197 = vmatprep.subr.mxu0 0.0
    %198 = vmatpush1.msra.mxu0 %v172
    %199 = vmatprep.subr.mxu0 0.0
    %200 = vmatpush1.msra.mxu0 0.0
    %201 = vmatprep.subr.mxu0 0.0
    %202 = vmatpush1.msra.mxu0 0.0
    %203 = vmatprep.subr.mxu0 0.0
    %204 = vmatpush1.msra.mxu0 0.0
    %205 = vmatprep.subr.mxu0 0.0
    %206 = vmatpush1.msra.mxu0 0.0
    %207 = vmatprep.subr.mxu0 0.0
    %208 = vmatpush1.msra.mxu0 0.0
    %209 = vmatprep.subr.mxu0 0.0
    %210 = vmatpush1.msra.mxu0 0.0
    %211 = vmatprep.subr.mxu0 0.0
    %212 = vmatpush1.msra.mxu0 0.0
    %213 = vmatprep.subr.mxu0 0.0
    %214 = vmatpush1.msra.mxu0 0.0
    %215 = vmatprep.subr.mxu0 0.0
    %216 = vmatpush1.msra.mxu0 0.0
    %217 = vmatprep.subr.mxu0 0.0
    %218 = vmatpush1.msra.mxu0 0.0
    %219 = vmatprep.subr.mxu0 0.0
    %220 = vmatpush1.msra.mxu0 0.0
    %221 = vmatprep.subr.mxu0 0.0
    %222 = vmatpush1.msra.mxu0 0.0
    %223 = vmatprep.subr.mxu0 0.0
    %224 = vmatpush1.msra.mxu0 0.0
    %225 = vmatprep.subr.mxu0 0.0
    %226 = vmatpush1.msra.mxu0 0.0
    %227 = vmatprep.subr.mxu0 0.0
    %228 = vmatpush1.msra.mxu0 0.0
    %229 = vmatprep.subr.mxu0 0.0
    %230 = vmatpush1.msra.mxu0 0.0
    %231 = vmatprep.subr.mxu0 0.0
    %232 = vmatpush1.msra.mxu0 0.0
    %233 = vmatprep.subr.mxu0 0.0
    %234 = vmatpush1.msra.mxu0 0.0
    %235 = vmatprep.subr.mxu0 0.0
    %236 = vmatpush1.msra.mxu0 0.0
    %237 = vmatprep.subr.mxu0 0.0
    %238 = vmatpush1.msra.mxu0 0.0
    %239 = vmatprep.subr.mxu0 0.0
    %240 = vmatpush1.msra.mxu0 0.0
    %241 = vmatprep.subr.mxu0 0.0
    %242 = vmatpush1.msra.mxu0 0.0
    %243 = vmatprep.subr.mxu0 0.0
    %244 = vmatpush1.msra.mxu0 0.0
    %245 = vmatprep.subr.mxu0 0.0
    %246 = vmatpush1.msra.mxu0 0.0
    %247 = vmatprep.mubr.f32.mxu0 0.0
    %248 = vmatmul.mubr.f32.gmra.mrb[0].mxu0 %v181
    %v249 = vpop.f32.mrb[0].mxu0
    %v250 = vadd.f32 %v178, %v249
    %v251 = vpop.f32.mrb[0].mxu0
    %252 = vdwg.mxu0
    %v253 = vmax.f32 %v250, 0.0
    %v254 = vld [vmem:[%s7] sm:$0xff]
    %v255 = vld [vmem:[%s7 + $0x8] sm:$0xff]
    %v256 = vld [vmem:[%s7 + $0x10] sm:$0xff]
    %v257 = vld [vmem:[%s7 + $0x18] sm:$0xff]
    %v258 = vld [vmem:[%s7 + $0x20] sm:$0xff]
    %v259 = vld [vmem:[%s7 + $0x28] sm:$0xff]
    %v260 = vld [vmem:[%s7 + $0x30] sm:$0xff]
    %v261 = vld [vmem:[%s7 + $0x38] sm:$0xff]
    %v262 = vld [vmem:[%s8] sm:$0x1]
    %v264 = vlaneseq
    %v265 = vshrl.u32 %v264, 7
    %v266 = vsub.s32 0, %v265
    %v267 = vrot.slane %v262, %v266
    %v270 = vsel %vm133, %v253, 0
    %272 = vmatprep.subr.mxu0 0.0
    %273 = vmatpush1.msra.mxu0 %v254
    %274 = vmatprep.subr.mxu0 0.0
    %275 = vmatpush1.msra.mxu0 %v255
    %276 = vmatprep.subr.mxu0 0.0
    %277 = vmatpush1.msra.mxu0 %v256
    %278 = vmatprep.subr.mxu0 0.0
    %279 = vmatpush1.msra.mxu0 %v257
    %280 = vmatprep.subr.mxu0 0.0
    %281 = vmatpush1.msra.mxu0 %v258
    %282 = vmatprep.subr.mxu0 0.0
    %283 = vmatpush1.msra.mxu0 %v259
    %284 = vmatprep.subr.mxu0 0.0
    %285 = vmatpush1.msra.mxu0 %v260
    %286 = vmatprep.subr.mxu0 0.0
    %287 = vmatpush1.msra.mxu0 %v261
    %288 = vmatprep.subr.mxu0 0.0
    %289 = vmatpush1.msra.mxu0 0.0
    %290 = vmatprep.subr.mxu0 0.0
    %291 = vmatpush1.msra.mxu0 0.0
    %292 = vmatprep.subr.mxu0 0.0
    %293 = vmatpush1.msra.mxu0 0.0
    %294 = vmatprep.subr.mxu0 0.0
    %295 = vmatpush1.msra.mxu0 0.0
    %296 = vmatprep.subr.mxu0 0.0
    %297 = vmatpush1.msra.mxu0 0.0
    %298 = vmatprep.subr.mxu0 0.0
    %299 = vmatpush1.msra.mxu0 0.0
    %300 = vmatprep.subr.mxu0 0.0
    %301 = vmatpush1.msra.mxu0 0.0
    %302 = vmatprep.subr.mxu0 0.0
    %303 = vmatpush1.msra.mxu0 0.0
    %304 = vmatprep.subr.mxu0 0.0
    %305 = vmatpush1.msra.mxu0 0.0
    %306 = vmatprep.subr.mxu0 0.0
    %307 = vmatpush1.msra.mxu0 0.0
    %308 = vmatprep.subr.mxu0 0.0
    %309 = vmatpush1.msra.mxu0 0.0
    %310 = vmatprep.subr.mxu0 0.0
    %311 = vmatpush1.msra.mxu0 0.0
    %312 = vmatprep.subr.mxu0 0.0
    %313 = vmatpush1.msra.mxu0 0.0
    %314 = vmatprep.subr.mxu0 0.0
    %315 = vmatpush1.msra.mxu0 0.0
    %316 = vmatprep.subr.mxu0 0.0
    %317 = vmatpush1.msra.mxu0 0.0
    %318 = vmatprep.subr.mxu0 0.0
    %319 = vmatpush1.msra.mxu0 0.0
    %320 = vmatprep.subr.mxu0 0.0
    %321 = vmatpush1.msra.mxu0 0.0
    %322 = vmatprep.subr.mxu0 0.0
    %323 = vmatpush1.msra.mxu0 0.0
    %324 = vmatprep.subr.mxu0 0.0
    %325 = vmatpush1.msra.mxu0 0.0
    %326 = vmatprep.subr.mxu0 0.0
    %327 = vmatpush1.msra.mxu0 0.0
    %328 = vmatprep.subr.mxu0 0.0
    %329 = vmatpush1.msra.mxu0 0.0
    %330 = vmatprep.subr.mxu0 0.0
    %331 = vmatpush1.msra.mxu0 0.0
    %332 = vmatprep.subr.mxu0 0.0
    %333 = vmatpush1.msra.mxu0 0.0
    %334 = vmatprep.subr.mxu0 0.0
    %335 = vmatpush1.msra.mxu0 0.0
    %336 = vmatprep.mubr.f32.mxu0 0.0
    %337 = vmatmul.mubr.f32.gmra.mrb[0].mxu0 %v270
    %v338 = vpop.f32.mrb[0].mxu0
    %v339 = vadd.f32 %v267, %v338
    %v340 = vpop.f32.mrb[0].mxu0
    %341 = vdwg.mxu0
    %vm342 = vcmask 64512
    %343 = vst.msk [vmem:[#allocation5] sm:$0xff] %vm342, %v339
    // Predicated region
    $region42: #{tpu_custom_call.1} parent=1 // pred_check
      _
    $region43: #{tpu_custom_call.1} parent=1 // pred_check_branch
      %345 = sbr.rel (0) target = $region45
    $region44: #{tpu_custom_call.1} parent=1 // pred_region
      %s347 = ssub.s32 128, 128
      %348 = vsyncadd [#allocation4], %s347
      %s350 = sshll.u32 [#allocation5], 4
      %s351 = int_to_ptr.vmem [resolvable:$true] %s350
      %353 = dma.vmem_to_hbm [thread:$0]  %s351, 128, %s9, [#allocation4]
    $region45: #{tpu_custom_call.1} parent=1 // pred_fallthru
      _
    // Predicated region
    $region46: #{tpu_custom_call.1} parent=1 // pred_check
      _
    $region47: #{tpu_custom_call.1} parent=1 // pred_check_branch
      %355 = sbr.rel (0) target = $region49
    $region48: #{tpu_custom_call.1} parent=1 // pred_region
      %356 = dma.done [#allocation4], 128
    $region49: #{tpu_custom_call.1} parent=1 // pred_fallthru
      _
    %357 = vsyncpa [#allocation3], 1
    %358 = vsyncpa [#allocation4], 1

</llo_original>
